<compile_context>
chip_gen: v7x
topology: tpu7x:2x2x1
jax: 0.10.0
libtpu: 0.0.40
codegen_flags: <defaults>
</compile_context>

<pallas_src>
import jax
import jax.numpy as jnp
from jax.experimental import pallas as pl
from jax.experimental.pallas import tpu as pltpu


def _linear_pos_emb_kernel(visn_ref, xemb_ref, yemb_ref, out_ref):
    # visn_ref: (tB, D, S)  raw NCHW slab for tB batch elements (S = W*H)
    # xemb_ref: (W, D)      x_position_embedding.weight[:W]  (VMEM-resident)
    # yemb_ref: (H, D)      y_position_embedding.weight[:H]  (VMEM-resident)
    # out_ref : (tB, S, D)
    W, D = xemb_ref.shape
    H = yemb_ref.shape[0]

    # pos[w*H + h, d] = x[w, d] + y[h, d]; sum in f32, cast once (VPU work,
    # hidden under the input/output DMAs).
    pos = (xemb_ref[...].astype(jnp.float32)[:, None, :]
           + yemb_ref[...].astype(jnp.float32)[None, :, :]).reshape(W * H, D)
    pos = pos.astype(out_ref.dtype)

    # Fused NCHW -> (spatial, channel): one 3-D minor-dim swap over the whole
    # batch tile (XLU), then a VPU broadcast add.  One HBM read, one write.
    out_ref[...] = pltpu.einshape("bds->bsd", visn_ref[...]) + pos[None, :, :]


def _chip_profile():
    """(target tile bytes, has 2 TensorCores, max vmem_limit_bytes)."""
    kind = ""
    try:
        kind = jax.devices()[0].device_kind.lower()
    except Exception:
        pass
    if "v7" in kind:
        # 2 TCs/chip, 64 MiB physical VMEM, 3.2 TB/s HBM -> smaller tiles,
        # keep >=2 grid steps so both cores drive independent DMA streams.
        return 5 << 20, True, 56 << 20
    # v5e / v6e (and unknown): 1 TC, 128 MiB physical VMEM -> bigger tiles.
    return 8 << 20, False, 100 << 20


def _pick_batch_tile(B, per_batch_bytes, target_bytes, two_core, max_tile=16):
    """Largest batch tile that (a) keeps the tile near `target_bytes`,
    (b) divides B evenly, (c) on v7x leaves >=2 grid steps for megacore."""
    tB = max(1, min(B, max_tile, target_bytes // max(per_batch_bytes, 1)))
    if two_core and B > 1:
        tB = min(tB, max(B // 2, 1))
    while B % tB:
        tB -= 1
    return tB


def linear_position_embedding(visn_feats_nchw, x_emb_table, y_emb_table):
    """visn_feats_nchw: (B, C, W, H); *_emb_table: (pos_num, C) -> (B, W*H, C)."""
    B, D, W, H = visn_feats_nchw.shape
    S = W * H
    assert x_emb_table.shape[0] >= W and y_emb_table.shape[0] >= H, (
        "position tables must cover the spatial extent (pos_num >= W, H)")
    dtype = visn_feats_nchw.dtype

    # Free, contiguous view of the raw NCHW tensor: (B, D, W*H). No HBM pass.
    visn = visn_feats_nchw.reshape(B, D, S)
    # position_ids = arange, w-major flattening (w*H + h), matching
    # permute(0,2,3,1).view(B,-1,C) in the reference module.
    x_emb = x_emb_table[:W]
    y_emb = y_emb_table[:H]

    itemsize = jnp.dtype(dtype).itemsize
    target_bytes, two_core, vmem_cap = _chip_profile()
    per_batch_bytes = S * D * itemsize
    tB = _pick_batch_tile(B, per_batch_bytes, target_bytes, two_core)
    tile_bytes = tB * per_batch_bytes
    emb_bytes = (W + H) * D * jnp.dtype(x_emb_table.dtype).itemsize

    # in + out tiles double-buffered by the pipeline, tiny x/y tables
    # double-buffered, plus headroom for the in-kernel transposed temp and the
    # f32 pos temp.
    vmem_needed = (4 * tile_bytes) + (4 * emb_bytes) + tile_bytes + S * D * 4 + (2 << 20)
    vmem_limit = int(min(max(vmem_needed, 32 << 20), vmem_cap))

    out = pl.pallas_call(
        _linear_pos_emb_kernel,
        out_shape=jax.ShapeDtypeStruct((B, S, D), dtype),
        grid=(B // tB,),
        in_specs=[
            pl.BlockSpec((tB, D, S), lambda b: (b, 0, 0)),
            pl.BlockSpec((W, D), lambda b: (0, 0)),   # constant -> fetched once
            pl.BlockSpec((H, D), lambda b: (0, 0)),   # constant -> fetched once
        ],
        out_specs=pl.BlockSpec((tB, S, D), lambda b: (b, 0, 0)),
        compiler_params=pltpu.CompilerParams(
            dimension_semantics=("parallel",),
            vmem_limit_bytes=vmem_limit,
        ),
    )(visn, x_emb, y_emb)

    # Already (B, W*H, C), matching PyTorch's permute(0,2,3,1).view(B, -1, C).
    return out


if __name__ == "__main__":
    # Small shapes consistent with the module: B=4, visual_feat_dim D=128
    # (lane-aligned, like production CLIP dims 768/1024/2048), 16x16 spatial
    # grid, pos_num = 16.
    B, D, W, H = 4, 128, 16, 16
    POS_NUM = 16

    key = jax.random.PRNGKey(0)
    k_x, k_emb_x, k_emb_y = jax.random.split(key, 3)

    visn_feats = jax.random.normal(k_x, (B, D, W, H), dtype=jnp.float32)   # NCHW
    # nn.Embedding default init is N(0, 1); deterministic synthetic weights.
    x_emb_table = jax.random.normal(k_emb_x, (POS_NUM, D), dtype=jnp.float32)
    y_emb_table = jax.random.normal(k_emb_y, (POS_NUM, D), dtype=jnp.float32)

    out = linear_position_embedding(visn_feats, x_emb_table, y_emb_table)
    out = jax.block_until_ready(out)

    # Pure-JAX reference for correctness.
    pos_ref = (x_emb_table[:W][:, None, :] + y_emb_table[:H][None, :, :]
               ).reshape(1, W * H, D)
    ref = jnp.transpose(visn_feats, (0, 2, 3, 1)).reshape(B, W * H, D) + pos_ref

    assert out.shape == (B, W * H, D)
    assert jnp.allclose(out, ref, atol=1e-6, rtol=1e-6)
    print("KERNEL_OK")
</pallas_src>

<mosaic_0001>
module attributes {stable_mosaic.version = 11 : i64} {
  func.func @_linear_pos_emb_kernel(%arg0: i32, %arg1: memref<4x128x256xf32, #tpu.memory_space<vmem>>, %arg2: memref<16x128xf32, #tpu.memory_space<vmem>>, %arg3: memref<16x128xf32, #tpu.memory_space<vmem>>, %arg4: memref<4x256x128xf32, #tpu.memory_space<vmem>>) attributes {dimension_semantics = [#tpu.dimension_semantics<parallel>], iteration_bounds = array<i64: 1>, scalar_prefetch = 0 : i64, scratch_operands = 0 : i64, tpu.core_type = #tpu.core_type<tc>, window_params = [{transform_indices = @transform_0, window_bounds = array<i64: 4, 128, 256>}, {pipeline_mode = #tpu.pipeline_mode<synchronous>, transform_indices = @transform_1, window_bounds = array<i64: 16, 128>}, {pipeline_mode = #tpu.pipeline_mode<synchronous>, transform_indices = @transform_2, window_bounds = array<i64: 16, 128>}, {transform_indices = @transform_3, window_bounds = array<i64: 4, 256, 128>}]} {
    %c0 = arith.constant 0 : index
    %c0_0 = arith.constant 0 : index
    %0 = vector.load %arg2[%c0, %c0_0] : memref<16x128xf32, #tpu.memory_space<vmem>>, vector<16x128xf32>
    %1 = vector.shape_cast %0 : vector<16x128xf32> to vector<16x1x128xf32>
    %c0_1 = arith.constant 0 : index
    %c0_2 = arith.constant 0 : index
    %2 = vector.load %arg3[%c0_1, %c0_2] : memref<16x128xf32, #tpu.memory_space<vmem>>, vector<16x128xf32>
    %3 = vector.shape_cast %2 : vector<16x128xf32> to vector<1x16x128xf32>
    %4 = vector.broadcast %1 : vector<16x1x128xf32> to vector<16x16x128xf32>
    %5 = vector.broadcast %3 : vector<1x16x128xf32> to vector<16x16x128xf32>
    %6 = arith.addf %4, %5 : vector<16x16x128xf32>
    %7 = vector.shape_cast %6 : vector<16x16x128xf32> to vector<256x128xf32>
    %c0_3 = arith.constant 0 : index
    %c0_4 = arith.constant 0 : index
    %c0_5 = arith.constant 0 : index
    %8 = vector.load %arg1[%c0_3, %c0_4, %c0_5] : memref<4x128x256xf32, #tpu.memory_space<vmem>>, vector<4x128x256xf32>
    %9 = tpu.transpose %8, [0, 2, 1] : vector<4x128x256xf32> -> vector<4x256x128xf32>
    %10 = vector.shape_cast %7 : vector<256x128xf32> to vector<1x256x128xf32>
    %11 = vector.broadcast %10 : vector<1x256x128xf32> to vector<4x256x128xf32>
    %12 = arith.addf %9, %11 : vector<4x256x128xf32>
    %c0_6 = arith.constant 0 : index
    %c0_7 = arith.constant 0 : index
    %c0_8 = arith.constant 0 : index
    %13 = vector.load %arg4[%c0_6, %c0_7, %c0_8] : memref<4x256x128xf32, #tpu.memory_space<vmem>>, vector<4x256x128xf32>
    tpu.vector_store %arg4[%c0_6, %c0_7, %c0_8], %12 {strides = array<i32>} : memref<4x256x128xf32, #tpu.memory_space<vmem>>, vector<4x256x128xf32>,
    return
  }
  func.func @transform_0(%arg0: i32) -> (i32, i32, i32) {
    %c0_i32 = arith.constant 0 : i32
    %c0_i32_0 = arith.constant 0 : i32
    %c0_i32_1 = arith.constant 0 : i32
    return %arg0, %c0_i32, %c0_i32_0 : i32, i32, i32
  }
  func.func @transform_1(%arg0: i32) -> (i32, i32) {
    %c0_i32 = arith.constant 0 : i32
    %c0_i32_0 = arith.constant 0 : i32
    %c0_i32_1 = arith.constant 0 : i32
    return %c0_i32, %c0_i32_0 : i32, i32
  }
  func.func @transform_2(%arg0: i32) -> (i32, i32) {
    %c0_i32 = arith.constant 0 : i32
    %c0_i32_0 = arith.constant 0 : i32
    %c0_i32_1 = arith.constant 0 : i32
    return %c0_i32, %c0_i32_0 : i32, i32
  }
  func.func @transform_3(%arg0: i32) -> (i32, i32, i32) {
    %c0_i32 = arith.constant 0 : i32
    %c0_i32_0 = arith.constant 0 : i32
    %c0_i32_1 = arith.constant 0 : i32
    return %arg0, %c0_i32, %c0_i32_0 : i32, i32, i32
  }
}

</mosaic_0001>

<llo_original>
// kernel: tpu_custom_call.1
$region0: #{tpu_custom_call.1}
  #allocation0 [shape = 'u32[]', space=smem, size = 0x4, offset = 0x4, fixed_abs, tag = 'smem constant byte address 0x4 - core index']
  #allocation1 [shape = 'u32[144,128]{1,0:T(1,128)}', space=vmem, size = 0x12000, scoped, tag = 'internal scratch']
  %s0 = inlined_call_operand.hbm [shape: f32[4,128,256], index: 0, kind: input, shape index: {}]
  %s1 = inlined_call_operand.hbm [shape: f32[16,128], index: 1, kind: input, shape index: {}]
  %s2 = inlined_call_operand.hbm [shape: f32[16,128], index: 2, kind: input, shape index: {}]
  %s3 = inlined_call_operand.hbm [shape: f32[4,256,128], index: 3, kind: output, shape index: {}]
  %s4 = sld [smem:[#allocation0]]
  $region34: #{tpu_custom_call.1} parent=0
    _
  %s6 = ssub.s32 1, %s4
  %s7 = scalar_select 0, %s6, %s4
  $region1: #{tpu_custom_call.1} parent=0
    #allocation2 [shape = 'u8[524288]{0}', space=vmem, size = 0x80000, scoped, tag = 'input window, operand 0, single buffered']
    #allocation3 [shape = 's32[1]{0}', space=sflag, size = 0x4, scoped, tag = 'scoped memory for tpu_custom_call.1']
    #allocation4 [shape = 's32[1]{0}', space=sflag, size = 0x4, scoped, tag = 'scoped memory for tpu_custom_call.1']
    #allocation5 [shape = 'u8[8192]{0}', space=vmem, size = 0x2000, scoped, tag = 'input window, operand 1, single buffered']
    #allocation6 [shape = 's32[1]{0}', space=sflag, size = 0x4, scoped, tag = 'scoped memory for tpu_custom_call.1']
    #allocation7 [shape = 'u8[8192]{0}', space=vmem, size = 0x2000, scoped, tag = 'input window, operand 2, single buffered']
    #allocation8 [shape = 'u8[524288]{0}', space=vmem, size = 0x80000, scoped, tag = 'output window, operand 0, single buffered']
    %8 = vsyncpa [#allocation3], 0
    %9 = vsyncpa [#allocation6], 0
    %10 = vsyncpa [#allocation4], 0
    // Predicated region
    $region2: #{tpu_custom_call.1} parent=1 // pred_check
      _
    $region3: #{tpu_custom_call.1} parent=1 // pred_check_branch
      %12 = sbr.rel (0) target = $region5
    $region4: #{tpu_custom_call.1} parent=1 // pred_region
      %s14 = ssub.s32 16384, 16384
      %15 = vsyncadd [#allocation3], %s14
      %s16 = sshll.u32 [#allocation2], 4
      %s17 = int_to_ptr.vmem [resolvable:$true] %s16
      %22 = dma.hbm_to_vmem [thread:$0]  %s0, 16384, %s17, [#allocation3], 256, 256, 16
    $region5: #{tpu_custom_call.1} parent=1 // pred_fallthru
      _
    // Predicated region
    $region6: #{tpu_custom_call.1} parent=1 // pred_check
      _
    $region7: #{tpu_custom_call.1} parent=1 // pred_check_branch
      %24 = sbr.rel (0) target = $region9
    $region8: #{tpu_custom_call.1} parent=1 // pred_region
      %s26 = ssub.s32 256, 256
      %27 = vsyncadd [#allocation6], %s26
      %s28 = sshll.u32 [#allocation5], 4
      %s29 = int_to_ptr.vmem [resolvable:$true] %s28
      %34 = dma.hbm_to_vmem [thread:$0]  %s1, 256, %s29, [#allocation6], 128, 128, 8
    $region9: #{tpu_custom_call.1} parent=1 // pred_fallthru
      _
    // Predicated region
    $region10: #{tpu_custom_call.1} parent=1 // pred_check
      _
    $region11: #{tpu_custom_call.1} parent=1 // pred_check_branch
      %36 = sbr.rel (0) target = $region13
    $region12: #{tpu_custom_call.1} parent=1 // pred_region
      %s38 = ssub.s32 256, 256
      %39 = vsyncadd [#allocation6], %s38
      %s40 = sshll.u32 [#allocation7], 4
      %s41 = int_to_ptr.vmem [resolvable:$true] %s40
      %46 = dma.hbm_to_vmem [thread:$0]  %s2, 256, %s41, [#allocation6], 128, 128, 8
    $region13: #{tpu_custom_call.1} parent=1 // pred_fallthru
      _
    // Predicated region
    $region14: #{tpu_custom_call.1} parent=1 // pred_check
      _
    $region15: #{tpu_custom_call.1} parent=1 // pred_check_branch
      %48 = sbr.rel (0) target = $region17
    $region16: #{tpu_custom_call.1} parent=1 // pred_region
      %49 = dma.done [#allocation3], 16384
    $region17: #{tpu_custom_call.1} parent=1 // pred_fallthru
      _
    // Predicated region
    $region18: #{tpu_custom_call.1} parent=1 // pred_check
      _
    $region19: #{tpu_custom_call.1} parent=1 // pred_check_branch
      %51 = sbr.rel (0) target = $region21
    $region20: #{tpu_custom_call.1} parent=1 // pred_region
      %52 = dma.done [#allocation6], 256
    $region21: #{tpu_custom_call.1} parent=1 // pred_fallthru
      _
    // Predicated region
    $region22: #{tpu_custom_call.1} parent=1 // pred_check
      _
    $region23: #{tpu_custom_call.1} parent=1 // pred_check_branch
      %54 = sbr.rel (0) target = $region25
    $region24: #{tpu_custom_call.1} parent=1 // pred_region
      %55 = dma.done [#allocation6], 256
    $region25: #{tpu_custom_call.1} parent=1 // pred_fallthru
      _
    %v56 = vld [vmem:[#allocation5] sm:$0xff]
    %v57 = vld [vmem:[#allocation5 + $0x8] sm:$0xff]
    %v60 = vcombine.high %v56, %v56
    %v62 = vunpack.c.l.s4 1966171168
    %v63 = vunpack.c.0.s8 %v62
    %v64 = vlaneseq
    %v65 = vshrl.u32 %v64, 7
    %v66 = vsub.s32 %v63, %v65
    %v67 = vrot.slane %v56, %v66
    %v69 = vunpack.c.l.s4 1966171168
    %v70 = vunpack.c.0.s8 %v69
    %v71 = vlaneseq
    %v72 = vshrl.u32 %v71, 7
    %v73 = vsub.s32 %v70, %v72
    %v74 = vrot.slane %v60, %v73
    %v75 = vcombine.high %v67, %v67
    %v76 = vcombine.high %v74, %v74
    %v78 = vunpack.c.l.s4 1966171168
    %v79 = vunpack.c.0.s8 %v78
    %v80 = vlaneseq
    %v81 = vshrl.u32 %v80, 7
    %v82 = vsub.s32 %v79, %v81
    %v83 = vrot.slane %v67, %v82
    %v85 = vunpack.c.l.s4 1966171168
    %v86 = vunpack.c.0.s8 %v85
    %v87 = vlaneseq
    %v88 = vshrl.u32 %v87, 7
    %v89 = vsub.s32 %v86, %v88
    %v90 = vrot.slane %v74, %v89
    %v92 = vunpack.c.l.s4 1966171168
    %v93 = vunpack.c.0.s8 %v92
    %v94 = vlaneseq
    %v95 = vshrl.u32 %v94, 7
    %v96 = vsub.s32 %v93, %v95
    %v97 = vrot.slane %v75, %v96
    %v99 = vunpack.c.l.s4 1966171168
    %v100 = vunpack.c.0.s8 %v99
    %v101 = vlaneseq
    %v102 = vshrl.u32 %v101, 7
    %v103 = vsub.s32 %v100, %v102
    %v104 = vrot.slane %v76, %v103
    %v105 = vcombine.high %v83, %v83
    %v106 = vcombine.high %v90, %v90
    %v107 = vcombine.high %v97, %v97
    %v108 = vcombine.high %v104, %v104
    %v109 = vcombine.high %v57, %v57
    %v111 = vunpack.c.l.s4 1966171168
    %v112 = vunpack.c.0.s8 %v111
    %v113 = vlaneseq
    %v114 = vshrl.u32 %v113, 7
    %v115 = vsub.s32 %v112, %v114
    %v116 = vrot.slane %v57, %v115
    %v118 = vunpack.c.l.s4 1966171168
    %v119 = vunpack.c.0.s8 %v118
    %v120 = vlaneseq
    %v121 = vshrl.u32 %v120, 7
    %v122 = vsub.s32 %v119, %v121
    %v123 = vrot.slane %v109, %v122
    %v124 = vcombine.high %v116, %v116
    %v125 = vcombine.high %v123, %v123
    %v127 = vunpack.c.l.s4 1966171168
    %v128 = vunpack.c.0.s8 %v127
    %v129 = vlaneseq
    %v130 = vshrl.u32 %v129, 7
    %v131 = vsub.s32 %v128, %v130
    %v132 = vrot.slane %v116, %v131
    %v134 = vunpack.c.l.s4 1966171168
    %v135 = vunpack.c.0.s8 %v134
    %v136 = vlaneseq
    %v137 = vshrl.u32 %v136, 7
    %v138 = vsub.s32 %v135, %v137
    %v139 = vrot.slane %v123, %v138
    %v141 = vunpack.c.l.s4 1966171168
    %v142 = vunpack.c.0.s8 %v141
    %v143 = vlaneseq
    %v144 = vshrl.u32 %v143, 7
    %v145 = vsub.s32 %v142, %v144
    %v146 = vrot.slane %v124, %v145
    %v148 = vunpack.c.l.s4 1966171168
    %v149 = vunpack.c.0.s8 %v148
    %v150 = vlaneseq
    %v151 = vshrl.u32 %v150, 7
    %v152 = vsub.s32 %v149, %v151
    %v153 = vrot.slane %v125, %v152
    %v154 = vcombine.high %v132, %v132
    %v155 = vcombine.high %v139, %v139
    %v156 = vcombine.high %v146, %v146
    %v157 = vcombine.high %v153, %v153
    %v158 = vld [vmem:[#allocation7] sm:$0xff]
    %v159 = vld [vmem:[#allocation7 + $0x8] sm:$0xff]
    %v160 = vlaneseq
    %v161 = vshrl.u32 %v160, 7
    %v162 = vsub.s32 0, %v161
    %v163 = vrot.slane %v83, %v162
    %v164 = vlaneseq
    %v165 = vshrl.u32 %v164, 7
    %v166 = vsub.s32 0, %v165
    %v167 = vrot.slane %v97, %v166
    %v168 = vlaneseq
    %v169 = vshrl.u32 %v168, 7
    %v170 = vsub.s32 0, %v169
    %v171 = vrot.slane %v105, %v170
    %v172 = vlaneseq
    %v173 = vshrl.u32 %v172, 7
    %v174 = vsub.s32 0, %v173
    %v175 = vrot.slane %v107, %v174
    %v176 = vlaneseq
    %v177 = vshrl.u32 %v176, 7
    %v178 = vsub.s32 0, %v177
    %v179 = vrot.slane %v90, %v178
    %v180 = vlaneseq
    %v181 = vshrl.u32 %v180, 7
    %v182 = vsub.s32 0, %v181
    %v183 = vrot.slane %v104, %v182
    %v184 = vlaneseq
    %v185 = vshrl.u32 %v184, 7
    %v186 = vsub.s32 0, %v185
    %v187 = vrot.slane %v106, %v186
    %v188 = vlaneseq
    %v189 = vshrl.u32 %v188, 7
    %v190 = vsub.s32 0, %v189
    %v191 = vrot.slane %v108, %v190
    %v192 = vlaneseq
    %v193 = vshrl.u32 %v192, 7
    %v194 = vsub.s32 0, %v193
    %v195 = vrot.slane %v132, %v194
    %v196 = vlaneseq
    %v197 = vshrl.u32 %v196, 7
    %v198 = vsub.s32 0, %v197
    %v199 = vrot.slane %v146, %v198
    %v200 = vlaneseq
    %v201 = vshrl.u32 %v200, 7
    %v202 = vsub.s32 0, %v201
    %v203 = vrot.slane %v154, %v202
    %v204 = vlaneseq
    %v205 = vshrl.u32 %v204, 7
    %v206 = vsub.s32 0, %v205
    %v207 = vrot.slane %v156, %v206
    %v208 = vlaneseq
    %v209 = vshrl.u32 %v208, 7
    %v210 = vsub.s32 0, %v209
    %v211 = vrot.slane %v139, %v210
    %v212 = vlaneseq
    %v213 = vshrl.u32 %v212, 7
    %v214 = vsub.s32 0, %v213
    %v215 = vrot.slane %v153, %v214
    %v216 = vlaneseq
    %v217 = vshrl.u32 %v216, 7
    %v218 = vsub.s32 0, %v217
    %v219 = vrot.slane %v155, %v218
    %v220 = vlaneseq
    %v221 = vshrl.u32 %v220, 7
    %v222 = vsub.s32 0, %v221
    %v223 = vrot.slane %v157, %v222
    %v240 = vadd.f32 %v163, %v158
    %v241 = vadd.f32 %v163, %v159
    %v242 = vadd.f32 %v167, %v158
    %v243 = vadd.f32 %v167, %v159
    %v244 = vadd.f32 %v171, %v158
    %v245 = vadd.f32 %v171, %v159
    %v246 = vadd.f32 %v175, %v158
    %v247 = vadd.f32 %v175, %v159
    %v248 = vadd.f32 %v179, %v158
    %v249 = vadd.f32 %v179, %v159
    %v250 = vadd.f32 %v183, %v158
    %v251 = vadd.f32 %v183, %v159
    %v252 = vadd.f32 %v187, %v158
    %v253 = vadd.f32 %v187, %v159
    %v254 = vadd.f32 %v191, %v158
    %v255 = vadd.f32 %v191, %v159
    %v256 = vadd.f32 %v195, %v158
    %v257 = vadd.f32 %v195, %v159
    %v258 = vadd.f32 %v199, %v158
    %v259 = vadd.f32 %v199, %v159
    %v260 = vadd.f32 %v203, %v158
    %v261 = vadd.f32 %v203, %v159
    %v262 = vadd.f32 %v207, %v158
    %v263 = vadd.f32 %v207, %v159
    %v264 = vadd.f32 %v211, %v158
    %v265 = vadd.f32 %v211, %v159
    %v266 = vadd.f32 %v215, %v158
    %v267 = vadd.f32 %v215, %v159
    %v268 = vadd.f32 %v219, %v158
    %v269 = vadd.f32 %v219, %v159
    %v270 = vadd.f32 %v223, %v158
    %v271 = vadd.f32 %v223, %v159
    %v272 = vld [vmem:[#allocation2] sm:$0xff]
    %v273 = vld [vmem:[#allocation2 + $0x8] sm:$0xff]
    %v274 = vld [vmem:[#allocation2 + $0x10] sm:$0xff]
    %v275 = vld [vmem:[#allocation2 + $0x18] sm:$0xff]
    %v276 = vld [vmem:[#allocation2 + $0x20] sm:$0xff]
    %v277 = vld [vmem:[#allocation2 + $0x28] sm:$0xff]
    %v278 = vld [vmem:[#allocation2 + $0x30] sm:$0xff]
    %v279 = vld [vmem:[#allocation2 + $0x38] sm:$0xff]
    %v280 = vld [vmem:[#allocation2 + $0x40] sm:$0xff]
    %v281 = vld [vmem:[#allocation2 + $0x48] sm:$0xff]
    %v282 = vld [vmem:[#allocation2 + $0x50] sm:$0xff]
    %v283 = vld [vmem:[#allocation2 + $0x58] sm:$0xff]
    %v284 = vld [vmem:[#allocation2 + $0x60] sm:$0xff]
    %v285 = vld [vmem:[#allocation2 + $0x68] sm:$0xff]
    %v286 = vld [vmem:[#allocation2 + $0x70] sm:$0xff]
    %v287 = vld [vmem:[#allocation2 + $0x78] sm:$0xff]
    %v288 = vld [vmem:[#allocation2 + $0x80] sm:$0xff]
    %v289 = vld [vmem:[#allocation2 + $0x88] sm:$0xff]
    %v290 = vld [vmem:[#allocation2 + $0x90] sm:$0xff]
    %v291 = vld [vmem:[#allocation2 + $0x98] sm:$0xff]
    %v292 = vld [vmem:[#allocation2 + $0xa0] sm:$0xff]
    %v293 = vld [vmem:[#allocation2 + $0xa8] sm:$0xff]
    %v294 = vld [vmem:[#allocation2 + $0xb0] sm:$0xff]
    %v295 = vld [vmem:[#allocation2 + $0xb8] sm:$0xff]
    %v296 = vld [vmem:[#allocation2 + $0xc0] sm:$0xff]
    %v297 = vld [vmem:[#allocation2 + $0xc8] sm:$0xff]
    %v298 = vld [vmem:[#allocation2 + $0xd0] sm:$0xff]
    %v299 = vld [vmem:[#allocation2 + $0xd8] sm:$0xff]
    %v300 = vld [vmem:[#allocation2 + $0xe0] sm:$0xff]
    %v301 = vld [vmem:[#allocation2 + $0xe8] sm:$0xff]
    %v302 = vld [vmem:[#allocation2 + $0xf0] sm:$0xff]
    %v303 = vld [vmem:[#allocation2 + $0xf8] sm:$0xff]
    %v304 = vld [vmem:[#allocation2 + $0x100] sm:$0xff]
    %v305 = vld [vmem:[#allocation2 + $0x108] sm:$0xff]
    %v306 = vld [vmem:[#allocation2 + $0x110] sm:$0xff]
    %v307 = vld [vmem:[#allocation2 + $0x118] sm:$0xff]
    %v308 = vld [vmem:[#allocation2 + $0x120] sm:$0xff]
    %v309 = vld [vmem:[#allocation2 + $0x128] sm:$0xff]
    %v310 = vld [vmem:[#allocation2 + $0x130] sm:$0xff]
    %v311 = vld [vmem:[#allocation2 + $0x138] sm:$0xff]
    %v312 = vld [vmem:[#allocation2 + $0x140] sm:$0xff]
    %v313 = vld [vmem:[#allocation2 + $0x148] sm:$0xff]
    %v314 = vld [vmem:[#allocation2 + $0x150] sm:$0xff]
    %v315 = vld [vmem:[#allocation2 + $0x158] sm:$0xff]
    %v316 = vld [vmem:[#allocation2 + $0x160] sm:$0xff]
    %v317 = vld [vmem:[#allocation2 + $0x168] sm:$0xff]
    %v318 = vld [vmem:[#allocation2 + $0x170] sm:$0xff]
    %v319 = vld [vmem:[#allocation2 + $0x178] sm:$0xff]
    %v320 = vld [vmem:[#allocation2 + $0x180] sm:$0xff]
    %v321 = vld [vmem:[#allocation2 + $0x188] sm:$0xff]
    %v322 = vld [vmem:[#allocation2 + $0x190] sm:$0xff]
    %v323 = vld [vmem:[#allocation2 + $0x198] sm:$0xff]
    %v324 = vld [vmem:[#allocation2 + $0x1a0] sm:$0xff]
    %v325 = vld [vmem:[#allocation2 + $0x1a8] sm:$0xff]
    %v326 = vld [vmem:[#allocation2 + $0x1b0] sm:$0xff]
    %v327 = vld [vmem:[#allocation2 + $0x1b8] sm:$0xff]
    %v328 = vld [vmem:[#allocation2 + $0x1c0] sm:$0xff]
    %v329 = vld [vmem:[#allocation2 + $0x1c8] sm:$0xff]
    %v330 = vld [vmem:[#allocation2 + $0x1d0] sm:$0xff]
    %v331 = vld [vmem:[#allocation2 + $0x1d8] sm:$0xff]
    %v332 = vld [vmem:[#allocation2 + $0x1e0] sm:$0xff]
    %v333 = vld [vmem:[#allocation2 + $0x1e8] sm:$0xff]
    %v334 = vld [vmem:[#allocation2 + $0x1f0] sm:$0xff]
    %v335 = vld [vmem:[#allocation2 + $0x1f8] sm:$0xff]
    %v336 = vld [vmem:[#allocation2 + $0x200] sm:$0xff]
    %v337 = vld [vmem:[#allocation2 + $0x208] sm:$0xff]
    %v338 = vld [vmem:[#allocation2 + $0x210] sm:$0xff]
    %v339 = vld [vmem:[#allocation2 + $0x218] sm:$0xff]
    %v340 = vld [vmem:[#allocation2 + $0x220] sm:$0xff]
    %v341 = vld [vmem:[#allocation2 + $0x228] sm:$0xff]
    %v342 = vld [vmem:[#allocation2 + $0x230] sm:$0xff]
    %v343 = vld [vmem:[#allocation2 + $0x238] sm:$0xff]
    %v344 = vld [vmem:[#allocation2 + $0x240] sm:$0xff]
    %v345 = vld [vmem:[#allocation2 + $0x248] sm:$0xff]
    %v346 = vld [vmem:[#allocation2 + $0x250] sm:$0xff]
    %v347 = vld [vmem:[#allocation2 + $0x258] sm:$0xff]
    %v348 = vld [vmem:[#allocation2 + $0x260] sm:$0xff]
    %v349 = vld [vmem:[#allocation2 + $0x268] sm:$0xff]
    %v350 = vld [vmem:[#allocation2 + $0x270] sm:$0xff]
    %v351 = vld [vmem:[#allocation2 + $0x278] sm:$0xff]
    %v352 = vld [vmem:[#allocation2 + $0x280] sm:$0xff]
    %v353 = vld [vmem:[#allocation2 + $0x288] sm:$0xff]
    %v354 = vld [vmem:[#allocation2 + $0x290] sm:$0xff]
    %v355 = vld [vmem:[#allocation2 + $0x298] sm:$0xff]
    %v356 = vld [vmem:[#allocation2 + $0x2a0] sm:$0xff]
    %v357 = vld [vmem:[#allocation2 + $0x2a8] sm:$0xff]
    %v358 = vld [vmem:[#allocation2 + $0x2b0] sm:$0xff]
    %v359 = vld [vmem:[#allocation2 + $0x2b8] sm:$0xff]
    %v360 = vld [vmem:[#allocation2 + $0x2c0] sm:$0xff]
    %v361 = vld [vmem:[#allocation2 + $0x2c8] sm:$0xff]
    %v362 = vld [vmem:[#allocation2 + $0x2d0] sm:$0xff]
    %v363 = vld [vmem:[#allocation2 + $0x2d8] sm:$0xff]
    %v364 = vld [vmem:[#allocation2 + $0x2e0] sm:$0xff]
    %v365 = vld [vmem:[#allocation2 + $0x2e8] sm:$0xff]
    %v366 = vld [vmem:[#allocation2 + $0x2f0] sm:$0xff]
    %v367 = vld [vmem:[#allocation2 + $0x2f8] sm:$0xff]
    %v368 = vld [vmem:[#allocation2 + $0x300] sm:$0xff]
    %v369 = vld [vmem:[#allocation2 + $0x308] sm:$0xff]
    %v370 = vld [vmem:[#allocation2 + $0x310] sm:$0xff]
    %v371 = vld [vmem:[#allocation2 + $0x318] sm:$0xff]
    %v372 = vld [vmem:[#allocation2 + $0x320] sm:$0xff]
    %v373 = vld [vmem:[#allocation2 + $0x328] sm:$0xff]
    %v374 = vld [vmem:[#allocation2 + $0x330] sm:$0xff]
    %v375 = vld [vmem:[#allocation2 + $0x338] sm:$0xff]
    %v376 = vld [vmem:[#allocation2 + $0x340] sm:$0xff]
    %v377 = vld [vmem:[#allocation2 + $0x348] sm:$0xff]
    %v378 = vld [vmem:[#allocation2 + $0x350] sm:$0xff]
    %v379 = vld [vmem:[#allocation2 + $0x358] sm:$0xff]
    %v380 = vld [vmem:[#allocation2 + $0x360] sm:$0xff]
    %v381 = vld [vmem:[#allocation2 + $0x368] sm:$0xff]
    %v382 = vld [vmem:[#allocation2 + $0x370] sm:$0xff]
    %v383 = vld [vmem:[#allocation2 + $0x378] sm:$0xff]
    %v384 = vld [vmem:[#allocation2 + $0x380] sm:$0xff]
    %v385 = vld [vmem:[#allocation2 + $0x388] sm:$0xff]
    %v386 = vld [vmem:[#allocation2 + $0x390] sm:$0xff]
    %v387 = vld [vmem:[#allocation2 + $0x398] sm:$0xff]
    %v388 = vld [vmem:[#allocation2 + $0x3a0] sm:$0xff]
    %v389 = vld [vmem:[#allocation2 + $0x3a8] sm:$0xff]
    %v390 = vld [vmem:[#allocation2 + $0x3b0] sm:$0xff]
    %v391 = vld [vmem:[#allocation2 + $0x3b8] sm:$0xff]
    %v392 = vld [vmem:[#allocation2 + $0x3c0] sm:$0xff]
    %v393 = vld [vmem:[#allocation2 + $0x3c8] sm:$0xff]
    %v394 = vld [vmem:[#allocation2 + $0x3d0] sm:$0xff]
    %v395 = vld [vmem:[#allocation2 + $0x3d8] sm:$0xff]
    %v396 = vld [vmem:[#allocation2 + $0x3e0] sm:$0xff]
    %v397 = vld [vmem:[#allocation2 + $0x3e8] sm:$0xff]
    %v398 = vld [vmem:[#allocation2 + $0x3f0] sm:$0xff]
    %v399 = vld [vmem:[#allocation2 + $0x3f8] sm:$0xff]
    %400 = vxpose.xlu0.b32.start [1/16] %v272, 128
    %401 = vxpose.xlu0.b32.cont [2/16] %v274, 128
    %402 = vxpose.xlu0.b32.cont [3/16] %v276, 128
    %403 = vxpose.xlu0.b32.cont [4/16] %v278, 128
    %404 = vxpose.xlu0.b32.cont [5/16] %v280, 128
    %405 = vxpose.xlu0.b32.cont [6/16] %v282, 128
    %406 = vxpose.xlu0.b32.cont [7/16] %v284, 128
    %407 = vxpose.xlu0.b32.cont [8/16] %v286, 128
    %408 = vxpose.xlu0.b32.cont [9/16] %v288, 128
    %409 = vxpose.xlu0.b32.cont [10/16] %v290, 128
    %410 = vxpose.xlu0.b32.cont [11/16] %v292, 128
    %411 = vxpose.xlu0.b32.cont [12/16] %v294, 128
    %412 = vxpose.xlu0.b32.cont [13/16] %v296, 128
    %413 = vxpose.xlu0.b32.cont [14/16] %v298, 128
    %414 = vxpose.xlu0.b32.cont [15/16] %v300, 128
    %415 = vxpose.xlu0.b32.end [16/16] %v302, 128
    %v416 = vpop.trf.xlu0
    %v417 = vpop.trf.xlu0
    %v418 = vpop.trf.xlu0
    %v419 = vpop.trf.xlu0
    %v420 = vpop.trf.xlu0
    %v421 = vpop.trf.xlu0
    %v422 = vpop.trf.xlu0
    %v423 = vpop.trf.xlu0
    %v424 = vpop.trf.xlu0
    %v425 = vpop.trf.xlu0
    %v426 = vpop.trf.xlu0
    %v427 = vpop.trf.xlu0
    %v428 = vpop.trf.xlu0
    %v429 = vpop.trf.xlu0
    %v430 = vpop.trf.xlu0
    %v431 = vpop.trf.xlu0
    %432 = vxpose.xlu0.b32.start [1/16] %v273, 128
    %433 = vxpose.xlu0.b32.cont [2/16] %v275, 128
    %434 = vxpose.xlu0.b32.cont [3/16] %v277, 128
    %435 = vxpose.xlu0.b32.cont [4/16] %v279, 128
    %436 = vxpose.xlu0.b32.cont [5/16] %v281, 128
    %437 = vxpose.xlu0.b32.cont [6/16] %v283, 128
    %438 = vxpose.xlu0.b32.cont [7/16] %v285, 128
    %439 = vxpose.xlu0.b32.cont [8/16] %v287, 128
    %440 = vxpose.xlu0.b32.cont [9/16] %v289, 128
    %441 = vxpose.xlu0.b32.cont [10/16] %v291, 128
    %442 = vxpose.xlu0.b32.cont [11/16] %v293, 128
    %443 = vxpose.xlu0.b32.cont [12/16] %v295, 128
    %444 = vxpose.xlu0.b32.cont [13/16] %v297, 128
    %445 = vxpose.xlu0.b32.cont [14/16] %v299, 128
    %446 = vxpose.xlu0.b32.cont [15/16] %v301, 128
    %447 = vxpose.xlu0.b32.end [16/16] %v303, 128
    %v448 = vpop.trf.xlu0
    %v449 = vpop.trf.xlu0
    %v450 = vpop.trf.xlu0
    %v451 = vpop.trf.xlu0
    %v452 = vpop.trf.xlu0
    %v453 = vpop.trf.xlu0
    %v454 = vpop.trf.xlu0
    %v455 = vpop.trf.xlu0
    %v456 = vpop.trf.xlu0
    %v457 = vpop.trf.xlu0
    %v458 = vpop.trf.xlu0
    %v459 = vpop.trf.xlu0
    %v460 = vpop.trf.xlu0
    %v461 = vpop.trf.xlu0
    %v462 = vpop.trf.xlu0
    %v463 = vpop.trf.xlu0
    %464 = vxpose.xlu0.b32.start [1/16] %v304, 128
    %465 = vxpose.xlu0.b32.cont [2/16] %v306, 128
    %466 = vxpose.xlu0.b32.cont [3/16] %v308, 128
    %467 = vxpose.xlu0.b32.cont [4/16] %v310, 128
    %468 = vxpose.xlu0.b32.cont [5/16] %v312, 128
    %469 = vxpose.xlu0.b32.cont [6/16] %v314, 128
    %470 = vxpose.xlu0.b32.cont [7/16] %v316, 128
    %471 = vxpose.xlu0.b32.cont [8/16] %v318, 128
    %472 = vxpose.xlu0.b32.cont [9/16] %v320, 128
    %473 = vxpose.xlu0.b32.cont [10/16] %v322, 128
    %474 = vxpose.xlu0.b32.cont [11/16] %v324, 128
    %475 = vxpose.xlu0.b32.cont [12/16] %v326, 128
    %476 = vxpose.xlu0.b32.cont [13/16] %v328, 128
    %477 = vxpose.xlu0.b32.cont [14/16] %v330, 128
    %478 = vxpose.xlu0.b32.cont [15/16] %v332, 128
    %479 = vxpose.xlu0.b32.end [16/16] %v334, 128
    %v480 = vpop.trf.xlu0
    %v481 = vpop.trf.xlu0
    %v482 = vpop.trf.xlu0
    %v483 = vpop.trf.xlu0
    %v484 = vpop.trf.xlu0
    %v485 = vpop.trf.xlu0
    %v486 = vpop.trf.xlu0
    %v487 = vpop.trf.xlu0
    %v488 = vpop.trf.xlu0
    %v489 = vpop.trf.xlu0
    %v490 = vpop.trf.xlu0
    %v491 = vpop.trf.xlu0
    %v492 = vpop.trf.xlu0
    %v493 = vpop.trf.xlu0
    %v494 = vpop.trf.xlu0
    %v495 = vpop.trf.xlu0
    %496 = vxpose.xlu0.b32.start [1/16] %v305, 128
    %497 = vxpose.xlu0.b32.cont [2/16] %v307, 128
    %498 = vxpose.xlu0.b32.cont [3/16] %v309, 128
    %499 = vxpose.xlu0.b32.cont [4/16] %v311, 128
    %500 = vxpose.xlu0.b32.cont [5/16] %v313, 128
    %501 = vxpose.xlu0.b32.cont [6/16] %v315, 128
    %502 = vxpose.xlu0.b32.cont [7/16] %v317, 128
    %503 = vxpose.xlu0.b32.cont [8/16] %v319, 128
    %504 = vxpose.xlu0.b32.cont [9/16] %v321, 128
    %505 = vxpose.xlu0.b32.cont [10/16] %v323, 128
    %506 = vxpose.xlu0.b32.cont [11/16] %v325, 128
    %507 = vxpose.xlu0.b32.cont [12/16] %v327, 128
    %508 = vxpose.xlu0.b32.cont [13/16] %v329, 128
    %509 = vxpose.xlu0.b32.cont [14/16] %v331, 128
    %510 = vxpose.xlu0.b32.cont [15/16] %v333, 128
    %511 = vxpose.xlu0.b32.end [16/16] %v335, 128
    %v512 = vpop.trf.xlu0
    %v513 = vpop.trf.xlu0
    %v514 = vpop.trf.xlu0
    %v515 = vpop.trf.xlu0
    %v516 = vpop.trf.xlu0
    %v517 = vpop.trf.xlu0
    %v518 = vpop.trf.xlu0
    %v519 = vpop.trf.xlu0
    %v520 = vpop.trf.xlu0
    %v521 = vpop.trf.xlu0
    %v522 = vpop.trf.xlu0
    %v523 = vpop.trf.xlu0
    %v524 = vpop.trf.xlu0
    %v525 = vpop.trf.xlu0
    %v526 = vpop.trf.xlu0
    %v527 = vpop.trf.xlu0
    %528 = vxpose.xlu0.b32.start [1/16] %v336, 128
    %529 = vxpose.xlu0.b32.cont [2/16] %v338, 128
    %530 = vxpose.xlu0.b32.cont [3/16] %v340, 128
    %531 = vxpose.xlu0.b32.cont [4/16] %v342, 128
    %532 = vxpose.xlu0.b32.cont [5/16] %v344, 128
    %533 = vxpose.xlu0.b32.cont [6/16] %v346, 128
    %534 = vxpose.xlu0.b32.cont [7/16] %v348, 128
    %535 = vxpose.xlu0.b32.cont [8/16] %v350, 128
    %536 = vxpose.xlu0.b32.cont [9/16] %v352, 128
    %537 = vxpose.xlu0.b32.cont [10/16] %v354, 128
    %538 = vxpose.xlu0.b32.cont [11/16] %v356, 128
    %539 = vxpose.xlu0.b32.cont [12/16] %v358, 128
    %540 = vxpose.xlu0.b32.cont [13/16] %v360, 128
    %541 = vxpose.xlu0.b32.cont [14/16] %v362, 128
    %542 = vxpose.xlu0.b32.cont [15/16] %v364, 128
    %543 = vxpose.xlu0.b32.end [16/16] %v366, 128
    %v544 = vpop.trf.xlu0
    %v545 = vpop.trf.xlu0
    %v546 = vpop.trf.xlu0
    %v547 = vpop.trf.xlu0
    %v548 = vpop.trf.xlu0
    %v549 = vpop.trf.xlu0
    %v550 = vpop.trf.xlu0
    %v551 = vpop.trf.xlu0
    %v552 = vpop.trf.xlu0
    %v553 = vpop.trf.xlu0
    %v554 = vpop.trf.xlu0
    %v555 = vpop.trf.xlu0
    %v556 = vpop.trf.xlu0
    %v557 = vpop.trf.xlu0
    %v558 = vpop.trf.xlu0
    %v559 = vpop.trf.xlu0
    %560 = vxpose.xlu0.b32.start [1/16] %v337, 128
    %561 = vxpose.xlu0.b32.cont [2/16] %v339, 128
    %562 = vxpose.xlu0.b32.cont [3/16] %v341, 128
    %563 = vxpose.xlu0.b32.cont [4/16] %v343, 128
    %564 = vxpose.xlu0.b32.cont [5/16] %v345, 128
    %565 = vxpose.xlu0.b32.cont [6/16] %v347, 128
    %566 = vxpose.xlu0.b32.cont [7/16] %v349, 128
    %567 = vxpose.xlu0.b32.cont [8/16] %v351, 128
    %568 = vxpose.xlu0.b32.cont [9/16] %v353, 128
    %569 = vxpose.xlu0.b32.cont [10/16] %v355, 128
    %570 = vxpose.xlu0.b32.cont [11/16] %v357, 128
    %571 = vxpose.xlu0.b32.cont [12/16] %v359, 128
    %572 = vxpose.xlu0.b32.cont [13/16] %v361, 128
    %573 = vxpose.xlu0.b32.cont [14/16] %v363, 128
    %574 = vxpose.xlu0.b32.cont [15/16] %v365, 128
    %575 = vxpose.xlu0.b32.end [16/16] %v367, 128
    %v576 = vpop.trf.xlu0
    %v577 = vpop.trf.xlu0
    %v578 = vpop.trf.xlu0
    %v579 = vpop.trf.xlu0
    %v580 = vpop.trf.xlu0
    %v581 = vpop.trf.xlu0
    %v582 = vpop.trf.xlu0
    %v583 = vpop.trf.xlu0
    %v584 = vpop.trf.xlu0
    %v585 = vpop.trf.xlu0
    %v586 = vpop.trf.xlu0
    %v587 = vpop.trf.xlu0
    %v588 = vpop.trf.xlu0
    %v589 = vpop.trf.xlu0
    %v590 = vpop.trf.xlu0
    %v591 = vpop.trf.xlu0
    %592 = vxpose.xlu0.b32.start [1/16] %v368, 128
    %593 = vxpose.xlu0.b32.cont [2/16] %v370, 128
    %594 = vxpose.xlu0.b32.cont [3/16] %v372, 128
    %595 = vxpose.xlu0.b32.cont [4/16] %v374, 128
    %596 = vxpose.xlu0.b32.cont [5/16] %v376, 128
    %597 = vxpose.xlu0.b32.cont [6/16] %v378, 128
    %598 = vxpose.xlu0.b32.cont [7/16] %v380, 128
    %599 = vxpose.xlu0.b32.cont [8/16] %v382, 128
    %600 = vxpose.xlu0.b32.cont [9/16] %v384, 128
    %601 = vxpose.xlu0.b32.cont [10/16] %v386, 128
    %602 = vxpose.xlu0.b32.cont [11/16] %v388, 128
    %603 = vxpose.xlu0.b32.cont [12/16] %v390, 128
    %604 = vxpose.xlu0.b32.cont [13/16] %v392, 128
    %605 = vxpose.xlu0.b32.cont [14/16] %v394, 128
    %606 = vxpose.xlu0.b32.cont [15/16] %v396, 128
    %607 = vxpose.xlu0.b32.end [16/16] %v398, 128
    %v608 = vpop.trf.xlu0
    %v609 = vpop.trf.xlu0
    %v610 = vpop.trf.xlu0
    %v611 = vpop.trf.xlu0
    %v612 = vpop.trf.xlu0
    %v613 = vpop.trf.xlu0
    %v614 = vpop.trf.xlu0
    %v615 = vpop.trf.xlu0
    %v616 = vpop.trf.xlu0
    %v617 = vpop.trf.xlu0
    %v618 = vpop.trf.xlu0
    %v619 = vpop.trf.xlu0
    %v620 = vpop.trf.xlu0
    %v621 = vpop.trf.xlu0
    %v622 = vpop.trf.xlu0
    %v623 = vpop.trf.xlu0
    %624 = vxpose.xlu0.b32.start [1/16] %v369, 128
    %625 = vxpose.xlu0.b32.cont [2/16] %v371, 128
    %626 = vxpose.xlu0.b32.cont [3/16] %v373, 128
    %627 = vxpose.xlu0.b32.cont [4/16] %v375, 128
    %628 = vxpose.xlu0.b32.cont [5/16] %v377, 128
    %629 = vxpose.xlu0.b32.cont [6/16] %v379, 128
    %630 = vxpose.xlu0.b32.cont [7/16] %v381, 128
    %631 = vxpose.xlu0.b32.cont [8/16] %v383, 128
    %632 = vxpose.xlu0.b32.cont [9/16] %v385, 128
    %633 = vxpose.xlu0.b32.cont [10/16] %v387, 128
    %634 = vxpose.xlu0.b32.cont [11/16] %v389, 128
    %635 = vxpose.xlu0.b32.cont [12/16] %v391, 128
    %636 = vxpose.xlu0.b32.cont [13/16] %v393, 128
    %637 = vxpose.xlu0.b32.cont [14/16] %v395, 128
    %638 = vxpose.xlu0.b32.cont [15/16] %v397, 128
    %639 = vxpose.xlu0.b32.end [16/16] %v399, 128
    %v640 = vpop.trf.xlu0
    %v641 = vpop.trf.xlu0
    %v642 = vpop.trf.xlu0
    %v643 = vpop.trf.xlu0
    %v644 = vpop.trf.xlu0
    %v645 = vpop.trf.xlu0
    %v646 = vpop.trf.xlu0
    %v647 = vpop.trf.xlu0
    %v648 = vpop.trf.xlu0
    %v649 = vpop.trf.xlu0
    %v650 = vpop.trf.xlu0
    %v651 = vpop.trf.xlu0
    %v652 = vpop.trf.xlu0
    %v653 = vpop.trf.xlu0
    %v654 = vpop.trf.xlu0
    %v655 = vpop.trf.xlu0
    %v656 = vadd.f32 %v416, %v240
    %v657 = vadd.f32 %v417, %v241
    %v658 = vadd.f32 %v418, %v242
    %v659 = vadd.f32 %v419, %v243
    %v660 = vadd.f32 %v420, %v244
    %v661 = vadd.f32 %v421, %v245
    %v662 = vadd.f32 %v422, %v246
    %v663 = vadd.f32 %v423, %v247
    %v664 = vadd.f32 %v424, %v248
    %v665 = vadd.f32 %v425, %v249
    %v666 = vadd.f32 %v426, %v250
    %v667 = vadd.f32 %v427, %v251
    %v668 = vadd.f32 %v428, %v252
    %v669 = vadd.f32 %v429, %v253
    %v670 = vadd.f32 %v430, %v254
    %v671 = vadd.f32 %v431, %v255
    %v672 = vadd.f32 %v448, %v256
    %v673 = vadd.f32 %v449, %v257
    %v674 = vadd.f32 %v450, %v258
    %v675 = vadd.f32 %v451, %v259
    %v676 = vadd.f32 %v452, %v260
    %v677 = vadd.f32 %v453, %v261
    %v678 = vadd.f32 %v454, %v262
    %v679 = vadd.f32 %v455, %v263
    %v680 = vadd.f32 %v456, %v264
    %v681 = vadd.f32 %v457, %v265
    %v682 = vadd.f32 %v458, %v266
    %v683 = vadd.f32 %v459, %v267
    %v684 = vadd.f32 %v460, %v268
    %v685 = vadd.f32 %v461, %v269
    %v686 = vadd.f32 %v462, %v270
    %v687 = vadd.f32 %v463, %v271
    %v688 = vadd.f32 %v480, %v240
    %v689 = vadd.f32 %v481, %v241
    %v690 = vadd.f32 %v482, %v242
    %v691 = vadd.f32 %v483, %v243
    %v692 = vadd.f32 %v484, %v244
    %v693 = vadd.f32 %v485, %v245
    %v694 = vadd.f32 %v486, %v246
    %v695 = vadd.f32 %v487, %v247
    %v696 = vadd.f32 %v488, %v248
    %v697 = vadd.f32 %v489, %v249
    %v698 = vadd.f32 %v490, %v250
    %v699 = vadd.f32 %v491, %v251
    %v700 = vadd.f32 %v492, %v252
    %v701 = vadd.f32 %v493, %v253
    %v702 = vadd.f32 %v494, %v254
    %v703 = vadd.f32 %v495, %v255
    %v704 = vadd.f32 %v512, %v256
    %v705 = vadd.f32 %v513, %v257
    %v706 = vadd.f32 %v514, %v258
    %v707 = vadd.f32 %v515, %v259
    %v708 = vadd.f32 %v516, %v260
    %v709 = vadd.f32 %v517, %v261
    %v710 = vadd.f32 %v518, %v262
    %v711 = vadd.f32 %v519, %v263
    %v712 = vadd.f32 %v520, %v264
    %v713 = vadd.f32 %v521, %v265
    %v714 = vadd.f32 %v522, %v266
    %v715 = vadd.f32 %v523, %v267
    %v716 = vadd.f32 %v524, %v268
    %v717 = vadd.f32 %v525, %v269
    %v718 = vadd.f32 %v526, %v270
    %v719 = vadd.f32 %v527, %v271
    %v720 = vadd.f32 %v544, %v240
    %v721 = vadd.f32 %v545, %v241
    %v722 = vadd.f32 %v546, %v242
    %v723 = vadd.f32 %v547, %v243
    %v724 = vadd.f32 %v548, %v244
    %v725 = vadd.f32 %v549, %v245
    %v726 = vadd.f32 %v550, %v246
    %v727 = vadd.f32 %v551, %v247
    %v728 = vadd.f32 %v552, %v248
    %v729 = vadd.f32 %v553, %v249
    %v730 = vadd.f32 %v554, %v250
    %v731 = vadd.f32 %v555, %v251
    %v732 = vadd.f32 %v556, %v252
    %v733 = vadd.f32 %v557, %v253
    %v734 = vadd.f32 %v558, %v254
    %v735 = vadd.f32 %v559, %v255
    %v736 = vadd.f32 %v576, %v256
    %v737 = vadd.f32 %v577, %v257
    %v738 = vadd.f32 %v578, %v258
    %v739 = vadd.f32 %v579, %v259
    %v740 = vadd.f32 %v580, %v260
    %v741 = vadd.f32 %v581, %v261
    %v742 = vadd.f32 %v582, %v262
    %v743 = vadd.f32 %v583, %v263
    %v744 = vadd.f32 %v584, %v264
    %v745 = vadd.f32 %v585, %v265
    %v746 = vadd.f32 %v586, %v266
    %v747 = vadd.f32 %v587, %v267
    %v748 = vadd.f32 %v588, %v268
    %v749 = vadd.f32 %v589, %v269
    %v750 = vadd.f32 %v590, %v270
    %v751 = vadd.f32 %v591, %v271
    %v752 = vadd.f32 %v608, %v240
    %v753 = vadd.f32 %v609, %v241
    %v754 = vadd.f32 %v610, %v242
    %v755 = vadd.f32 %v611, %v243
    %v756 = vadd.f32 %v612, %v244
    %v757 = vadd.f32 %v613, %v245
    %v758 = vadd.f32 %v614, %v246
    %v759 = vadd.f32 %v615, %v247
    %v760 = vadd.f32 %v616, %v248
    %v761 = vadd.f32 %v617, %v249
    %v762 = vadd.f32 %v618, %v250
    %v763 = vadd.f32 %v619, %v251
    %v764 = vadd.f32 %v620, %v252
    %v765 = vadd.f32 %v621, %v253
    %v766 = vadd.f32 %v622, %v254
    %v767 = vadd.f32 %v623, %v255
    %v768 = vadd.f32 %v640, %v256
    %v769 = vadd.f32 %v641, %v257
    %v770 = vadd.f32 %v642, %v258
    %v771 = vadd.f32 %v643, %v259
    %v772 = vadd.f32 %v644, %v260
    %v773 = vadd.f32 %v645, %v261
    %v774 = vadd.f32 %v646, %v262
    %v775 = vadd.f32 %v647, %v263
    %v776 = vadd.f32 %v648, %v264
    %v777 = vadd.f32 %v649, %v265
    %v778 = vadd.f32 %v650, %v266
    %v779 = vadd.f32 %v651, %v267
    %v780 = vadd.f32 %v652, %v268
    %v781 = vadd.f32 %v653, %v269
    %v782 = vadd.f32 %v654, %v270
    %v783 = vadd.f32 %v655, %v271
    %784 = vst [vmem:[#allocation8] sm:$0xff] %v656
    %785 = vst [vmem:[#allocation8 + $0x8] sm:$0xff] %v657
    %786 = vst [vmem:[#allocation8 + $0x10] sm:$0xff] %v658
    %787 = vst [vmem:[#allocation8 + $0x18] sm:$0xff] %v659
    %788 = vst [vmem:[#allocation8 + $0x20] sm:$0xff] %v660
    %789 = vst [vmem:[#allocation8 + $0x28] sm:$0xff] %v661
    %790 = vst [vmem:[#allocation8 + $0x30] sm:$0xff] %v662
    %791 = vst [vmem:[#allocation8 + $0x38] sm:$0xff] %v663
    %792 = vst [vmem:[#allocation8 + $0x40] sm:$0xff] %v664
    %793 = vst [vmem:[#allocation8 + $0x48] sm:$0xff] %v665
    %794 = vst [vmem:[#allocation8 + $0x50] sm:$0xff] %v666
    %795 = vst [vmem:[#allocation8 + $0x58] sm:$0xff] %v667
    %796 = vst [vmem:[#allocation8 + $0x60] sm:$0xff] %v668
    %797 = vst [vmem:[#allocation8 + $0x68] sm:$0xff] %v669
    %798 = vst [vmem:[#allocation8 + $0x70] sm:$0xff] %v670
    %799 = vst [vmem:[#allocation8 + $0x78] sm:$0xff] %v671
    %800 = vst [vmem:[#allocation8 + $0x80] sm:$0xff] %v672
    %801 = vst [vmem:[#allocation8 + $0x88] sm:$0xff] %v673
    %802 = vst [vmem:[#allocation8 + $0x90] sm:$0xff] %v674
    %803 = vst [vmem:[#allocation8 + $0x98] sm:$0xff] %v675
    %804 = vst [vmem:[#allocation8 + $0xa0] sm:$0xff] %v676
    %805 = vst [vmem:[#allocation8 + $0xa8] sm:$0xff] %v677
    %806 = vst [vmem:[#allocation8 + $0xb0] sm:$0xff] %v678
    %807 = vst [vmem:[#allocation8 + $0xb8] sm:$0xff] %v679
    %808 = vst [vmem:[#allocation8 + $0xc0] sm:$0xff] %v680
    %809 = vst [vmem:[#allocation8 + $0xc8] sm:$0xff] %v681
    %810 = vst [vmem:[#allocation8 + $0xd0] sm:$0xff] %v682
    %811 = vst [vmem:[#allocation8 + $0xd8] sm:$0xff] %v683
    %812 = vst [vmem:[#allocation8 + $0xe0] sm:$0xff] %v684
    %813 = vst [vmem:[#allocation8 + $0xe8] sm:$0xff] %v685
    %814 = vst [vmem:[#allocation8 + $0xf0] sm:$0xff] %v686
    %815 = vst [vmem:[#allocation8 + $0xf8] sm:$0xff] %v687
    %816 = vst [vmem:[#allocation8 + $0x100] sm:$0xff] %v688
    %817 = vst [vmem:[#allocation8 + $0x108] sm:$0xff] %v689
    %818 = vst [vmem:[#allocation8 + $0x110] sm:$0xff] %v690
    %819 = vst [vmem:[#allocation8 + $0x118] sm:$0xff] %v691
    %820 = vst [vmem:[#allocation8 + $0x120] sm:$0xff] %v692
    %821 = vst [vmem:[#allocation8 + $0x128] sm:$0xff] %v693
    %822 = vst [vmem:[#allocation8 + $0x130] sm:$0xff] %v694
    %823 = vst [vmem:[#allocation8 + $0x138] sm:$0xff] %v695
    %824 = vst [vmem:[#allocation8 + $0x140] sm:$0xff] %v696
    %825 = vst [vmem:[#allocation8 + $0x148] sm:$0xff] %v697
    %826 = vst [vmem:[#allocation8 + $0x150] sm:$0xff] %v698
    %827 = vst [vmem:[#allocation8 + $0x158] sm:$0xff] %v699
    %828 = vst [vmem:[#allocation8 + $0x160] sm:$0xff] %v700
    %829 = vst [vmem:[#allocation8 + $0x168] sm:$0xff] %v701
    %830 = vst [vmem:[#allocation8 + $0x170] sm:$0xff] %v702
    %831 = vst [vmem:[#allocation8 + $0x178] sm:$0xff] %v703
    %832 = vst [vmem:[#allocation8 + $0x180] sm:$0xff] %v704
    %833 = vst [vmem:[#allocation8 + $0x188] sm:$0xff] %v705
    %834 = vst [vmem:[#allocation8 + $0x190] sm:$0xff] %v706
    %835 = vst [vmem:[#allocation8 + $0x198] sm:$0xff] %v707
    %836 = vst [vmem:[#allocation8 + $0x1a0] sm:$0xff] %v708
    %837 = vst [vmem:[#allocation8 + $0x1a8] sm:$0xff] %v709
    %838 = vst [vmem:[#allocation8 + $0x1b0] sm:$0xff] %v710
    %839 = vst [vmem:[#allocation8 + $0x1b8] sm:$0xff] %v711
    %840 = vst [vmem:[#allocation8 + $0x1c0] sm:$0xff] %v712
    %841 = vst [vmem:[#allocation8 + $0x1c8] sm:$0xff] %v713
    %842 = vst [vmem:[#allocation8 + $0x1d0] sm:$0xff] %v714
    %843 = vst [vmem:[#allocation8 + $0x1d8] sm:$0xff] %v715
    %844 = vst [vmem:[#allocation8 + $0x1e0] sm:$0xff] %v716
    %845 = vst [vmem:[#allocation8 + $0x1e8] sm:$0xff] %v717
    %846 = vst [vmem:[#allocation8 + $0x1f0] sm:$0xff] %v718
    %847 = vst [vmem:[#allocation8 + $0x1f8] sm:$0xff] %v719
    %848 = vst [vmem:[#allocation8 + $0x200] sm:$0xff] %v720
    %849 = vst [vmem:[#allocation8 + $0x208] sm:$0xff] %v721
    %850 = vst [vmem:[#allocation8 + $0x210] sm:$0xff] %v722
    %851 = vst [vmem:[#allocation8 + $0x218] sm:$0xff] %v723
    %852 = vst [vmem:[#allocation8 + $0x220] sm:$0xff] %v724
    %853 = vst [vmem:[#allocation8 + $0x228] sm:$0xff] %v725
    %854 = vst [vmem:[#allocation8 + $0x230] sm:$0xff] %v726
    %855 = vst [vmem:[#allocation8 + $0x238] sm:$0xff] %v727
    %856 = vst [vmem:[#allocation8 + $0x240] sm:$0xff] %v728
    %857 = vst [vmem:[#allocation8 + $0x248] sm:$0xff] %v729
    %858 = vst [vmem:[#allocation8 + $0x250] sm:$0xff] %v730
    %859 = vst [vmem:[#allocation8 + $0x258] sm:$0xff] %v731
    %860 = vst [vmem:[#allocation8 + $0x260] sm:$0xff] %v732
    %861 = vst [vmem:[#allocation8 + $0x268] sm:$0xff] %v733
    %862 = vst [vmem:[#allocation8 + $0x270] sm:$0xff] %v734
    %863 = vst [vmem:[#allocation8 + $0x278] sm:$0xff] %v735
    %864 = vst [vmem:[#allocation8 + $0x280] sm:$0xff] %v736
    %865 = vst [vmem:[#allocation8 + $0x288] sm:$0xff] %v737
    %866 = vst [vmem:[#allocation8 + $0x290] sm:$0xff] %v738
    %867 = vst [vmem:[#allocation8 + $0x298] sm:$0xff] %v739
    %868 = vst [vmem:[#allocation8 + $0x2a0] sm:$0xff] %v740
    %869 = vst [vmem:[#allocation8 + $0x2a8] sm:$0xff] %v741
    %870 = vst [vmem:[#allocation8 + $0x2b0] sm:$0xff] %v742
    %871 = vst [vmem:[#allocation8 + $0x2b8] sm:$0xff] %v743
    %872 = vst [vmem:[#allocation8 + $0x2c0] sm:$0xff] %v744
    %873 = vst [vmem:[#allocation8 + $0x2c8] sm:$0xff] %v745
    %874 = vst [vmem:[#allocation8 + $0x2d0] sm:$0xff] %v746
    %875 = vst [vmem:[#allocation8 + $0x2d8] sm:$0xff] %v747
    %876 = vst [vmem:[#allocation8 + $0x2e0] sm:$0xff] %v748
    %877 = vst [vmem:[#allocation8 + $0x2e8] sm:$0xff] %v749
    %878 = vst [vmem:[#allocation8 + $0x2f0] sm:$0xff] %v750
    %879 = vst [vmem:[#allocation8 + $0x2f8] sm:$0xff] %v751
    %880 = vst [vmem:[#allocation8 + $0x300] sm:$0xff] %v752
    %881 = vst [vmem:[#allocation8 + $0x308] sm:$0xff] %v753
    %882 = vst [vmem:[#allocation8 + $0x310] sm:$0xff] %v754
    %883 = vst [vmem:[#allocation8 + $0x318] sm:$0xff] %v755
    %884 = vst [vmem:[#allocation8 + $0x320] sm:$0xff] %v756
    %885 = vst [vmem:[#allocation8 + $0x328] sm:$0xff] %v757
    %886 = vst [vmem:[#allocation8 + $0x330] sm:$0xff] %v758
    %887 = vst [vmem:[#allocation8 + $0x338] sm:$0xff] %v759
    %888 = vst [vmem:[#allocation8 + $0x340] sm:$0xff] %v760
    %889 = vst [vmem:[#allocation8 + $0x348] sm:$0xff] %v761
    %890 = vst [vmem:[#allocation8 + $0x350] sm:$0xff] %v762
    %891 = vst [vmem:[#allocation8 + $0x358] sm:$0xff] %v763
    %892 = vst [vmem:[#allocation8 + $0x360] sm:$0xff] %v764
    %893 = vst [vmem:[#allocation8 + $0x368] sm:$0xff] %v765
    %894 = vst [vmem:[#allocation8 + $0x370] sm:$0xff] %v766
    %895 = vst [vmem:[#allocation8 + $0x378] sm:$0xff] %v767
    %896 = vst [vmem:[#allocation8 + $0x380] sm:$0xff] %v768
    %897 = vst [vmem:[#allocation8 + $0x388] sm:$0xff] %v769
    %898 = vst [vmem:[#allocation8 + $0x390] sm:$0xff] %v770
    %899 = vst [vmem:[#allocation8 + $0x398] sm:$0xff] %v771
    %900 = vst [vmem:[#allocation8 + $0x3a0] sm:$0xff] %v772
    %901 = vst [vmem:[#allocation8 + $0x3a8] sm:$0xff] %v773
    %902 = vst [vmem:[#allocation8 + $0x3b0] sm:$0xff] %v774
    %903 = vst [vmem:[#allocation8 + $0x3b8] sm:$0xff] %v775
    %904 = vst [vmem:[#allocation8 + $0x3c0] sm:$0xff] %v776
    %905 = vst [vmem:[#allocation8 + $0x3c8] sm:$0xff] %v777
    %906 = vst [vmem:[#allocation8 + $0x3d0] sm:$0xff] %v778
    %907 = vst [vmem:[#allocation8 + $0x3d8] sm:$0xff] %v779
    %908 = vst [vmem:[#allocation8 + $0x3e0] sm:$0xff] %v780
    %909 = vst [vmem:[#allocation8 + $0x3e8] sm:$0xff] %v781
    %910 = vst [vmem:[#allocation8 + $0x3f0] sm:$0xff] %v782
    %911 = vst [vmem:[#allocation8 + $0x3f8] sm:$0xff] %v783
    // Predicated region
    $region26: #{tpu_custom_call.1} parent=1 // pred_check
      _
    $region27: #{tpu_custom_call.1} parent=1 // pred_check_branch
      %913 = sbr.rel (0) target = $region29
    $region28: #{tpu_custom_call.1} parent=1 // pred_region
      %s915 = ssub.s32 16384, 16384
      %916 = vsyncadd [#allocation4], %s915
      %s917 = sshll.u32 [#allocation8], 4
      %s918 = int_to_ptr.vmem [resolvable:$true] %s917
      %923 = dma.vmem_to_hbm [thread:$0]  %s918, 16384, %s3, [#allocation4], 128, 128, 8
    $region29: #{tpu_custom_call.1} parent=1 // pred_fallthru
      _
    // Predicated region
    $region30: #{tpu_custom_call.1} parent=1 // pred_check
      _
    $region31: #{tpu_custom_call.1} parent=1 // pred_check_branch
      %925 = sbr.rel (0) target = $region33
    $region32: #{tpu_custom_call.1} parent=1 // pred_region
      %926 = dma.done [#allocation4], 16384
    $region33: #{tpu_custom_call.1} parent=1 // pred_fallthru
      _
    %927 = vsyncpa [#allocation3], 1
    %928 = vsyncpa [#allocation6], 1
    %929 = vsyncpa [#allocation4], 1

</llo_original>
